<compile_context>
chip_gen: v7x
topology: tpu7x:2x2x1
jax: 0.10.0
libtpu: 0.0.40
codegen_flags: <defaults>
</compile_context>

<pallas_src>
import functools
import math

import jax
import jax.numpy as jnp
from jax.experimental import pallas as pl
from jax.experimental.pallas import tpu as pltpu

BN_EPS = 1e-5
LANE = 128


def _round_up(x, m):
    return (x + m - 1) // m * m


@functools.lru_cache(maxsize=None)
def _vmem_limit_bytes():
    """Generation-aware scoped-VMEM limit: ~7/8 of physical VMEM."""
    cap = 64 * 1024 * 1024  # conservative fallback (v7x physical per-core VMEM)
    try:
        cap = int(pltpu.get_tpu_info().vmem_capacity_bytes)
    except Exception:
        pass
    return (cap * 7) // 8


def _compiler_params():
    return pltpu.CompilerParams(
        dimension_semantics=("parallel",),  # megacore sharding of the M-tile axis (v7x)
        vmem_limit_bytes=_vmem_limit_bytes(),
    )


def _pick_tiling(M, K, cp, vmem_limit):
    """Row tiling of the flattened N*Ho*Wo axis, sized from K, Cp and VMEM budget."""
    budget = int(vmem_limit * 0.6)               # headroom for compiler scratch
    fixed = 2 * (2 * K * cp)                     # (K, cp) bf16 weight block, double-buffered
    per_row = 2 * (2 * K + 2 * cp) + 2 * 4 * cp  # bf16 x & y blocks (x2 bufs) + f32 epilogue slack
    tile = (budget - fixed) // per_row
    tile = max(min(tile, 2048), 256)
    tile = min(tile, max(-(-M // 2), 16))        # >=2 grid steps when M allows (v7x megacore)
    tile = max((tile // 16) * 16, 16)            # bf16 sublane packing
    return tile, _round_up(M, tile)


# ----------------------------------------------------------------------------
# Pallas kernels
# ----------------------------------------------------------------------------
def conv_stats_kernel(x_ref, w_ref, b_ref, y_ref, sum_ref, ssq_ref):
    """One MXU matmul per M-tile over the full K = kh*kw*Cin contraction.

    x_ref  : (tile_m, K)  bf16 im2col tile
    w_ref  : (K, Cp)      bf16 masked weights (index_map constant -> fetched once)
    b_ref  : (1, Cp)      f32 masked bias
    y_ref  : (tile_m, Cp) bf16 conv output tile (bf16 activation storage)
    sum_ref: (1, 1, Cp)   f32 per-tile per-channel sum of the stored values
    ssq_ref: (1, 1, Cp)   f32 per-tile per-channel sum of squares
    Padded M rows are exact zeros -> they store exactly bf16(bias); that constant
    contribution is removed analytically in bn_params_from_stats (no masking here).
    """
    y = jnp.dot(x_ref[...], w_ref[...], preferred_element_type=jnp.float32) + b_ref[...]
    yb = y.astype(y_ref.dtype)
    y_ref[...] = yb
    yf = yb.astype(jnp.float32)
    sum_ref[0] = jnp.sum(yf, axis=0, keepdims=True)
    ssq_ref[0] = jnp.sum(yf * yf, axis=0, keepdims=True)


def bn_relu_kernel(a_ref, s_ref, t_ref, o_ref):
    # relu(bn1(conv1(x))) with BN folded into per-channel scale/shift; bf16 out.
    a = a_ref[...].astype(jnp.float32)
    o_ref[...] = jnp.maximum(a * s_ref[...] + t_ref[...], 0.0).astype(o_ref.dtype)


def bn_add_bn_relu_kernel(a_ref, sa_ref, ta_ref, r_ref, sr_ref, tr_ref, o_ref):
    # relu(bn2(conv2(out)) + bn_sc(conv_sc(x))) -- conv-shortcut branch.
    a = a_ref[...].astype(jnp.float32)
    r = r_ref[...].astype(jnp.float32)
    o_ref[...] = jnp.maximum(
        a * sa_ref[...] + ta_ref[...] + r * sr_ref[...] + tr_ref[...], 0.0)


def bn_add_relu_kernel(a_ref, sa_ref, ta_ref, r_ref, o_ref):
    # relu(bn2(conv2(out)) + x) -- identity-shortcut branch (no dummy scale/shift).
    a = a_ref[...].astype(jnp.float32)
    r = r_ref[...].astype(jnp.float32)
    o_ref[...] = jnp.maximum(a * sa_ref[...] + ta_ref[...] + r, 0.0)


# ----------------------------------------------------------------------------
# pallas_call wrappers (tiled over M, lane-dense Cp, parallel grid axis)
# ----------------------------------------------------------------------------
def conv_bn_stats_call(x_cols_bf16, w_kc_bf16, bias_f32, tile_m):
    m_pad, K = x_cols_bf16.shape
    cp = w_kc_bf16.shape[1]
    n_tiles = m_pad // tile_m
    row_x = pl.BlockSpec((tile_m, K), lambda i: (i, 0))
    w_spec = pl.BlockSpec((K, cp), lambda i: (0, 0))
    b_spec = pl.BlockSpec((1, cp), lambda i: (0, 0))
    y_spec = pl.BlockSpec((tile_m, cp), lambda i: (i, 0))
    st_spec = pl.BlockSpec((1, 1, cp), lambda i: (i, 0, 0))
    return pl.pallas_call(
        conv_stats_kernel,
        out_shape=(jax.ShapeDtypeStruct((m_pad, cp), jnp.bfloat16),
                   jax.ShapeDtypeStruct((n_tiles, 1, cp), jnp.float32),
                   jax.ShapeDtypeStruct((n_tiles, 1, cp), jnp.float32)),
        grid_spec=pltpu.PrefetchScalarGridSpec(
            num_scalar_prefetch=0,
            grid=(n_tiles,),
            in_specs=[row_x, w_spec, b_spec],
            out_specs=(y_spec, st_spec, st_spec)),
        compiler_params=_compiler_params(),
    )(x_cols_bf16, w_kc_bf16, bias_f32)


def fused_bn_relu(a, scale, shift, tile_m):
    m_pad, cp = a.shape
    row = pl.BlockSpec((tile_m, cp), lambda i: (i, 0))
    bc = pl.BlockSpec((1, cp), lambda i: (0, 0))
    return pl.pallas_call(
        bn_relu_kernel,
        out_shape=jax.ShapeDtypeStruct((m_pad, cp), jnp.bfloat16),
        grid_spec=pltpu.PrefetchScalarGridSpec(
            num_scalar_prefetch=0, grid=(m_pad // tile_m,),
            in_specs=[row, bc, bc], out_specs=row),
        compiler_params=_compiler_params(),
    )(a, scale, shift)


def fused_bn_residual_relu(a, sa, ta, r, sr, tr, tile_m):
    m_pad, cp = a.shape
    row = pl.BlockSpec((tile_m, cp), lambda i: (i, 0))
    bc = pl.BlockSpec((1, cp), lambda i: (0, 0))
    return pl.pallas_call(
        bn_add_bn_relu_kernel,
        out_shape=jax.ShapeDtypeStruct((m_pad, cp), jnp.float32),
        grid_spec=pltpu.PrefetchScalarGridSpec(
            num_scalar_prefetch=0, grid=(m_pad // tile_m,),
            in_specs=[row, bc, bc, row, bc, bc], out_specs=row),
        compiler_params=_compiler_params(),
    )(a, sa, ta, r, sr, tr)


def fused_bn_identity_relu(a, sa, ta, r, tile_m):
    m_pad, cp = a.shape
    row = pl.BlockSpec((tile_m, cp), lambda i: (i, 0))
    bc = pl.BlockSpec((1, cp), lambda i: (0, 0))
    return pl.pallas_call(
        bn_add_relu_kernel,
        out_shape=jax.ShapeDtypeStruct((m_pad, cp), jnp.float32),
        grid_spec=pltpu.PrefetchScalarGridSpec(
            num_scalar_prefetch=0, grid=(m_pad // tile_m,),
            in_specs=[row, bc, bc, row], out_specs=row),
        compiler_params=_compiler_params(),
    )(a, sa, ta, r)


# ----------------------------------------------------------------------------
# SupermaskConv: GetSubnet mask (plain JAX) + bf16 im2col + Pallas matmul
# ----------------------------------------------------------------------------
def apply_supermask(w, b, sw, sb, sparsity):
    # Mirrors: GetSubnet.apply(cat(|sw|.flatten(), |sb|.flatten()), sparsity)
    nw = w.size
    flat = jnp.concatenate([jnp.abs(sw).reshape(-1), jnp.abs(sb).reshape(-1)])
    j = int((1.0 - sparsity) * flat.size)
    order = jnp.argsort(flat)
    mask = jnp.zeros(flat.shape, flat.dtype).at[order[j:]].set(1.0)
    return w * mask[:nw].reshape(w.shape), b * mask[nw:]


def im2col(x_nhwc, kh, kw, stride, padding):
    """(N,H,W,C) -> (N*Ho*Wo, kh*kw*C); built in the input dtype (bf16 here) so
    the patch matrix hits HBM once at half the f32 footprint."""
    N, H, W, C = x_nhwc.shape
    xp = jnp.pad(x_nhwc, ((0, 0), (padding, padding), (padding, padding), (0, 0)))
    Hp, Wp = H + 2 * padding, W + 2 * padding
    Ho = (Hp - kh) // stride + 1
    Wo = (Wp - kw) // stride + 1
    cols = []
    for ky in range(kh):
        for kx in range(kw):
            patch = jax.lax.slice(
                xp,
                (0, ky, kx, 0),
                (N, ky + (Ho - 1) * stride + 1, kx + (Wo - 1) * stride + 1, C),
                (1, stride, stride, 1))
            cols.append(patch.reshape(N * Ho * Wo, C))
    return jnp.concatenate(cols, axis=-1), (Ho, Wo)


def bn_params_from_stats(ssum, ssq, m_real, m_pad, bias_row):
    """BatchNorm2d(affine=False) training batch stats -> per-channel scale/shift.

    Padded rows stored exactly bf16(bias); remove that constant contribution
    analytically instead of masking rows inside the conv kernel.
    """
    n_pad = m_pad - m_real
    bq = bias_row.astype(jnp.bfloat16).astype(jnp.float32)   # value the padded rows stored
    total = jnp.sum(ssum, axis=0) - n_pad * bq                # (1, cp)
    total_sq = jnp.sum(ssq, axis=0) - n_pad * bq * bq         # (1, cp)
    mean = total / m_real
    var = jnp.maximum(total_sq / m_real - mean * mean, 0.0)
    scale = jax.lax.rsqrt(var + BN_EPS)
    return scale, -mean * scale


def supermask_conv_bn(x_nhwc_bf16, p, sparsity, stride, padding, tile_m, m_pad):
    """Masked conv (one Pallas MXU matmul per tile) + BN batch-stat fold.

    Returns: y (m_pad, Cp) bf16 conv output (row/channel padded),
             scale, shift (1, Cp) f32 BN fold, (Ho, Wo).
    """
    w_m, b_m = apply_supermask(p["w"], p["b"], p["sw"], p["sb"], sparsity)
    Cout, Cin, kh, kw = w_m.shape
    cp = _round_up(Cout, LANE)

    cols, (Ho, Wo) = im2col(x_nhwc_bf16, kh, kw, stride, padding)   # bf16 (M, K)
    M = cols.shape[0]
    assert m_pad >= M and m_pad % tile_m == 0
    if m_pad > M:
        cols = jnp.pad(cols, ((0, m_pad - M), (0, 0)))

    # Weight -> (K, Cp) bf16 MXU operand; f32 accumulation in-kernel.
    w_kc = jnp.transpose(w_m, (2, 3, 1, 0)).reshape(kh * kw * Cin, Cout)
    w_kc = jnp.pad(w_kc, ((0, 0), (0, cp - Cout))).astype(jnp.bfloat16)
    bias = jnp.pad(b_m, (0, cp - Cout)).reshape(1, cp).astype(jnp.float32)

    y, ssum, ssq = conv_bn_stats_call(cols, w_kc, bias, tile_m)
    scale, shift = bn_params_from_stats(ssum, ssq, M, m_pad, bias)
    return y, scale, shift, (Ho, Wo)


# ----------------------------------------------------------------------------
# BasicBlock forward
# ----------------------------------------------------------------------------
def basic_block_forward(x_nchw, params, sparsity, stride, in_planes, planes):
    N, _, H, W = x_nchw.shape
    # NCHW -> NHWC, bf16 activations at every kernel boundary (MXU operand dtype).
    x_bf = jnp.transpose(x_nchw, (0, 2, 3, 1)).astype(jnp.bfloat16)

    # All three convs of the block share the same output M = N*Ho*Wo -> one tiling.
    Ho = (H + 2 - 3) // stride + 1
    Wo = (W + 2 - 3) // stride + 1
    M = N * Ho * Wo
    cp = _round_up(planes, LANE)
    k_max = max(in_planes, planes) * 9
    tile_m, m_pad = _pick_tiling(M, k_max, cp, _vmem_limit_bytes())

    # out = relu(bn1(conv1(x)))
    y1, s1, t1, (h1, w1) = supermask_conv_bn(
        x_bf, params["conv1"], sparsity, stride, 1, tile_m, m_pad)
    assert (h1, w1) == (Ho, Wo)
    o1 = fused_bn_relu(y1, s1, t1, tile_m)              # bf16 (m_pad, cp)
    o1 = o1[:M, :planes].reshape(N, Ho, Wo, planes)     # bf16 NHWC -> conv2 operand

    # out = bn2(conv2(out))  (BN folded to scale/shift, applied in the fused epilogue)
    y2, s2, t2, _ = supermask_conv_bn(
        o1, params["conv2"], sparsity, 1, 1, tile_m, m_pad)

    # out += shortcut(x); out = relu(out)   (single fused Pallas pass)
    if stride != 1 or in_planes != planes:
        ys, ss, ts, _ = supermask_conv_bn(
            x_bf, params["shortcut"], sparsity, stride, 0, tile_m, m_pad)
        assert ys.shape == y2.shape
        out2d = fused_bn_residual_relu(y2, s2, t2, ys, ss, ts, tile_m)
    else:
        # Identity shortcut: one bf16 pad (no f32 scatter copy, no dummy scale/shift).
        assert M == N * H * W
        r = jnp.pad(x_bf.reshape(N * H * W, in_planes),
                    ((0, m_pad - M), (0, cp - in_planes)))
        out2d = fused_bn_identity_relu(y2, s2, t2, r, tile_m)

    out = out2d[:M, :planes].reshape(N, Ho, Wo, planes).transpose(0, 3, 1, 2)
    return out


# ----------------------------------------------------------------------------
# Pure-JAX reference mirroring the kernel's precision contract
# (bf16 MXU operands + bf16 activation storage; BN/elementwise in f32)
# ----------------------------------------------------------------------------
def _ref_supermask_conv(x_nhwc, p, sparsity, stride, padding):
    w_m, b_m = apply_supermask(p["w"], p["b"], p["sw"], p["sb"], sparsity)
    w_hwio = jnp.transpose(w_m, (2, 3, 1, 0)).astype(jnp.bfloat16)
    y = jax.lax.conv_general_dilated(
        x_nhwc.astype(jnp.bfloat16), w_hwio,
        window_strides=(stride, stride),
        padding=((padding, padding), (padding, padding)),
        dimension_numbers=("NHWC", "HWIO", "NHWC"),
        preferred_element_type=jnp.float32)
    y = y + b_m.reshape(1, 1, 1, -1)
    return y.astype(jnp.bfloat16).astype(jnp.float32)   # mirror bf16 storage


def _ref_bn(y):
    mean = jnp.mean(y, axis=(0, 1, 2), keepdims=True)
    var = jnp.mean((y - mean) ** 2, axis=(0, 1, 2), keepdims=True)
    return (y - mean) * jax.lax.rsqrt(var + BN_EPS)


def ref_block(x_nchw, params, sparsity, stride, in_planes, planes):
    x = jnp.transpose(x_nchw, (0, 2, 3, 1)).astype(jnp.float32)
    o = jax.nn.relu(_ref_bn(_ref_supermask_conv(x, params["conv1"], sparsity, stride, 1)))
    o = _ref_bn(_ref_supermask_conv(o, params["conv2"], sparsity, 1, 1))
    if stride != 1 or in_planes != planes:
        sc = _ref_bn(_ref_supermask_conv(x, params["shortcut"], sparsity, stride, 0))
    else:
        sc = x.astype(jnp.bfloat16).astype(jnp.float32)  # kernel adds the residual in bf16
    return jnp.transpose(jax.nn.relu(o + sc), (0, 3, 1, 2))


# ----------------------------------------------------------------------------
# Deterministic parameter init (shapes follow SupermaskConv.__init__)
# ----------------------------------------------------------------------------
def init_supermask_conv(key, in_planes, out_planes, ksize):
    k1, k2, k3, k4 = jax.random.split(key, 4)
    fan_in = in_planes * ksize * ksize
    bound = 1.0 / math.sqrt(fan_in)
    return {
        "w": jax.random.uniform(k1, (out_planes, in_planes, ksize, ksize),
                                jnp.float32, -bound, bound),
        "b": jax.random.uniform(k2, (out_planes,), jnp.float32, -bound, bound),
        "sw": jax.random.uniform(k3, (out_planes, in_planes, ksize, ksize),
                                 jnp.float32, -bound, bound),
        "sb": jax.random.uniform(k4, (out_planes,), jnp.float32, -bound, bound),
    }


if __name__ == "__main__":
    key = jax.random.PRNGKey(0)
    kx, k1, k2, k3, k4, k5 = jax.random.split(key, 6)

    sparsity = 0.5

    # --- branch 1: downsampling block (stride=2, conv shortcut) ---
    N, in_planes, planes, H, W = 2, 4, 8, 16, 16
    stride = 2
    x = jax.random.normal(kx, (N, in_planes, H, W), jnp.float32)
    params = {
        "conv1": init_supermask_conv(k1, in_planes, planes, 3),
        "conv2": init_supermask_conv(k2, planes, planes, 3),
        "shortcut": init_supermask_conv(k3, in_planes, planes, 1),
    }
    out = jax.block_until_ready(
        basic_block_forward(x, params, sparsity, stride, in_planes, planes))
    ref = ref_block(x, params, sparsity, stride, in_planes, planes)
    Ho = (H + 2 - 3) // stride + 1
    assert out.shape == (N, planes, Ho, Ho), out.shape
    assert bool(jnp.all(jnp.isfinite(out))) and bool(jnp.all(out >= 0.0))
    assert bool(jnp.allclose(out, ref, atol=1e-2, rtol=1e-2)), \
        float(jnp.max(jnp.abs(out - ref)))

    # --- branch 2: identity shortcut (stride=1, in_planes == planes) ---
    params_id = {
        "conv1": init_supermask_conv(k4, planes, planes, 3),
        "conv2": init_supermask_conv(k5, planes, planes, 3),
    }
    x2 = jax.random.normal(kx, (N, planes, H, W), jnp.float32)
    out2 = jax.block_until_ready(
        basic_block_forward(x2, params_id, sparsity, 1, planes, planes))
    ref2 = ref_block(x2, params_id, sparsity, 1, planes, planes)
    assert out2.shape == (N, planes, H, W), out2.shape
    assert bool(jnp.all(jnp.isfinite(out2))) and bool(jnp.all(out2 >= 0.0))
    assert bool(jnp.allclose(out2, ref2, atol=1e-2, rtol=1e-2)), \
        float(jnp.max(jnp.abs(out2 - ref2)))

    print("KERNEL_OK")
</pallas_src>

<mosaic_0001>
module attributes {stable_mosaic.version = 11 : i64} {
  func.func @conv_stats_kernel(%arg0: i32, %arg1: memref<64x36xbf16, #tpu.memory_space<vmem>>, %arg2: memref<36x128xbf16, #tpu.memory_space<vmem>>, %arg3: memref<1x128xf32, #tpu.memory_space<vmem>>, %arg4: memref<64x128xbf16, #tpu.memory_space<vmem>>, %arg5: memref<1x1x128xf32, #tpu.memory_space<vmem>>, %arg6: memref<1x1x128xf32, #tpu.memory_space<vmem>>) attributes {dimension_semantics = [#tpu.dimension_semantics<parallel>], iteration_bounds = array<i64: 2>, scalar_prefetch = 0 : i64, scratch_operands = 0 : i64, tpu.core_type = #tpu.core_type<tc>, window_params = [{transform_indices = @transform_0, window_bounds = array<i64: 64, 36>}, {pipeline_mode = #tpu.pipeline_mode<synchronous>, transform_indices = @transform_1, window_bounds = array<i64: 36, 128>}, {pipeline_mode = #tpu.pipeline_mode<synchronous>, transform_indices = @transform_2, window_bounds = array<i64: 1, 128>}, {transform_indices = @transform_3, window_bounds = array<i64: 64, 128>}, {transform_indices = @transform_4, window_bounds = array<i64: 1, 1, 128>}, {transform_indices = @transform_5, window_bounds = array<i64: 1, 1, 128>}]} {
    %c0 = arith.constant 0 : index
    %c0_0 = arith.constant 0 : index
    %0 = vector.load %arg1[%c0, %c0_0] : memref<64x36xbf16, #tpu.memory_space<vmem>>, vector<64x36xbf16>
    %c0_1 = arith.constant 0 : index
    %c0_2 = arith.constant 0 : index
    %1 = vector.load %arg2[%c0_1, %c0_2] : memref<36x128xbf16, #tpu.memory_space<vmem>>, vector<36x128xbf16>
    %cst = arith.constant dense<0.000000e+00> : vector<64x128xf32>
    %2 = tpu.matmul %0, %1, %cst {dimension_numbers = #tpu.dot_dimension_numbers<[1], [0], [0], [1], [0, 0, 1, 1], [], []>} : vector<64x36xbf16>, vector<36x128xbf16>, vector<64x128xf32> -> vector<64x128xf32>
    %c0_3 = arith.constant 0 : index
    %c0_4 = arith.constant 0 : index
    %3 = vector.load %arg3[%c0_3, %c0_4] : memref<1x128xf32, #tpu.memory_space<vmem>>, vector<1x128xf32>
    %4 = vector.broadcast %3 : vector<1x128xf32> to vector<64x128xf32>
    %5 = arith.addf %2, %4 : vector<64x128xf32>
    %6 = arith.truncf %5 : vector<64x128xf32> to vector<64x128xbf16>
    %c0_5 = arith.constant 0 : index
    %c0_6 = arith.constant 0 : index
    %7 = vector.load %arg4[%c0_5, %c0_6] : memref<64x128xbf16, #tpu.memory_space<vmem>>, vector<64x128xbf16>
    tpu.vector_store %arg4[%c0_5, %c0_6], %6 {strides = array<i32>} : memref<64x128xbf16, #tpu.memory_space<vmem>>, vector<64x128xbf16>,
    %8 = arith.extf %6 : vector<64x128xbf16> to vector<64x128xf32>
    %cst_7 = arith.constant dense<0.000000e+00> : vector<128xf32>
    %9 = vector.multi_reduction <add>, %8, %cst_7 [0] : vector<64x128xf32> to vector<128xf32>
    %10 = vector.shape_cast %9 : vector<128xf32> to vector<1x128xf32>
    %c0_8 = arith.constant 0 : index
    %c0_9 = arith.constant 0 : index
    %c0_10 = arith.constant 0 : index
    %11 = vector.load %arg5[%c0_8, %c0_9, %c0_10] : memref<1x1x128xf32, #tpu.memory_space<vmem>>, vector<1x1x128xf32>
    %12 = vector.shape_cast %11 : vector<1x1x128xf32> to vector<1x128xf32>
    %13 = vector.shape_cast %10 : vector<1x128xf32> to vector<1x1x128xf32>
    tpu.vector_store %arg5[%c0_8, %c0_9, %c0_10], %13 {strides = array<i32>} : memref<1x1x128xf32, #tpu.memory_space<vmem>>, vector<1x1x128xf32>,
    %14 = arith.mulf %8, %8 : vector<64x128xf32>
    %cst_11 = arith.constant dense<0.000000e+00> : vector<128xf32>
    %15 = vector.multi_reduction <add>, %14, %cst_11 [0] : vector<64x128xf32> to vector<128xf32>
    %16 = vector.shape_cast %15 : vector<128xf32> to vector<1x128xf32>
    %c0_12 = arith.constant 0 : index
    %c0_13 = arith.constant 0 : index
    %c0_14 = arith.constant 0 : index
    %17 = vector.load %arg6[%c0_12, %c0_13, %c0_14] : memref<1x1x128xf32, #tpu.memory_space<vmem>>, vector<1x1x128xf32>
    %18 = vector.shape_cast %17 : vector<1x1x128xf32> to vector<1x128xf32>
    %19 = vector.shape_cast %16 : vector<1x128xf32> to vector<1x1x128xf32>
    tpu.vector_store %arg6[%c0_12, %c0_13, %c0_14], %19 {strides = array<i32>} : memref<1x1x128xf32, #tpu.memory_space<vmem>>, vector<1x1x128xf32>,
    return
  }
  func.func @transform_0(%arg0: i32) -> (i32, i32) {
    %c0_i32 = arith.constant 0 : i32
    %c0_i32_0 = arith.constant 0 : i32
    return %arg0, %c0_i32 : i32, i32
  }
  func.func @transform_1(%arg0: i32) -> (i32, i32) {
    %c0_i32 = arith.constant 0 : i32
    %c0_i32_0 = arith.constant 0 : i32
    %c0_i32_1 = arith.constant 0 : i32
    return %c0_i32, %c0_i32_0 : i32, i32
  }
  func.func @transform_2(%arg0: i32) -> (i32, i32) {
    %c0_i32 = arith.constant 0 : i32
    %c0_i32_0 = arith.constant 0 : i32
    %c0_i32_1 = arith.constant 0 : i32
    return %c0_i32, %c0_i32_0 : i32, i32
  }
  func.func @transform_3(%arg0: i32) -> (i32, i32) {
    %c0_i32 = arith.constant 0 : i32
    %c0_i32_0 = arith.constant 0 : i32
    return %arg0, %c0_i32 : i32, i32
  }
  func.func @transform_4(%arg0: i32) -> (i32, i32, i32) {
    %c0_i32 = arith.constant 0 : i32
    %c0_i32_0 = arith.constant 0 : i32
    %c0_i32_1 = arith.constant 0 : i32
    return %arg0, %c0_i32, %c0_i32_0 : i32, i32, i32
  }
  func.func @transform_5(%arg0: i32) -> (i32, i32, i32) {
    %c0_i32 = arith.constant 0 : i32
    %c0_i32_0 = arith.constant 0 : i32
    %c0_i32_1 = arith.constant 0 : i32
    return %arg0, %c0_i32, %c0_i32_0 : i32, i32, i32
  }
}

</mosaic_0001>

<llo_original>
// kernel: tpu_custom_call.1
$region0: #{tpu_custom_call.1}
  #allocation0 [shape = 'u32[]', space=smem, size = 0x4, offset = 0x4, fixed_abs, tag = 'smem constant byte address 0x4 - core index']
  #allocation1 [shape = 'u32[144,128]{1,0:T(1,128)}', space=vmem, size = 0x12000, scoped, tag = 'internal scratch']
  %s0 = inlined_call_operand.vmem [shape: bf16[128,36], index: 0, kind: input, shape index: {}]
  %s1 = inlined_call_operand.vmem [shape: bf16[36,128], index: 1, kind: input, shape index: {}]
  %s2 = inlined_call_operand.vmem [shape: f32[1,128], index: 2, kind: input, shape index: {}]
  %s3 = inlined_call_operand.hbm [shape: bf16[128,128], index: 3, kind: output, shape index: {0}]
  %s4 = inlined_call_operand.hbm [shape: f32[2,1,128], index: 4, kind: output, shape index: {1}]
  %s5 = inlined_call_operand.hbm [shape: f32[2,1,128], index: 5, kind: output, shape index: {2}]
  %6 = xla_tuple %s3, %s4, %s5
  %s7 = sld [smem:[#allocation0]]
  $region61: #{tpu_custom_call.1} parent=0
    _
  %s9 = ssub.s32 1, %s7
  %s10 = scalar_select 0, %s9, %s7
  $region1: #{tpu_custom_call.1} parent=0
    #allocation2 [shape = 'u8[32768]{0}', space=vmem, size = 0x8000, scoped, tag = 'output window, operand 0']
    #allocation3 [shape = 's32[2]{0}', space=sflag, size = 0x8, scoped, tag = 'scoped memory for tpu_custom_call.1']
    #allocation4 [shape = 'u8[1024]{0}', space=vmem, size = 0x400, scoped, tag = 'output window, operand 1']
    #allocation5 [shape = 's32[2]{0}', space=sflag, size = 0x8, scoped, tag = 'scoped memory for tpu_custom_call.1']
    #allocation6 [shape = 'u8[1024]{0}', space=vmem, size = 0x400, scoped, tag = 'output window, operand 2']
    %11 = vsyncpa [#allocation3], 0
    %s12 = scalar_lea.sflag [#allocation3], 1
    %13 = vsyncpa %s12, 0
    %14 = vsyncpa [#allocation5], 0
    %s15 = scalar_lea.sflag [#allocation5], 1
    %16 = vsyncpa %s15, 0
    loop: start=0, step=1, limit=4
    $region2: #{tpu_custom_call.1} parent=1 // loop_pre_header
      _
    $region3: #{tpu_custom_call.1} parent=1 // loop_header
      %s18 = sphi 0, %s22
      %p19 = scmp.ge.s32.totalorder %s18, 4
      %s28 = sphi 0, %s30
      %s31 = sphi 0, %s28
      %s32 = sphi 0, %s31
      %s48 = sphi 0, %s32
      %s52 = sphi 0, %s52
      %s54 = sphi 0, %s52
      %s55 = sphi 0, %s54
      %s69 = sphi 0, %s55
      %s73 = sphi 0, %s73
      %s75 = sphi 0, %s73
      %s76 = sphi 0, %s75
      %s90 = sphi 0, %s76
      %s96 = sphi 0, %s98
      %s99 = sphi 0, %s96
      %s100 = sphi 0, %s99
      %s116 = sphi 0, %s100
      %s122 = sphi 0, %s124
      %s125 = sphi 0, %s122
      %s126 = sphi 0, %s125
      %s142 = sphi 0, %s126
      %s148 = sphi 0, %s150
      %s151 = sphi 0, %s148
      %s152 = sphi 0, %s151
      %s168 = sphi 0, %s152
    $region4: #{tpu_custom_call.1} parent=1 // loop_header_branch
      %21 = sbr.rel (%p19) target = $region8
    $region5: #{tpu_custom_call.1} parent=1 // loop_body
      %s23 = ssub.s32 %s18, 1
      %s24 = ssub.s32 %s18, 2
      %s25 = sadd.s32 %s18, 1
      %s26 = ssub.s32 %s18, %s25
      %p27 = scmp.eq.s32.totalorder %s26, 0
      %s29 = sadd.s32 %s28, 1
      %s30 = scalar_select %p27, %s28, %s29
      %p33 = pneg %p27
      %p34 = scmp.eq.s32.totalorder %s18, 1
      %p35 = por %p33, %p34
      %p36 = scmp.ne.s32.totalorder %s28, %s31
      %p37 = scmp.eq.s32.totalorder %s18, 0
      %p38 = por %p36, %p37
      %p39 = scmp.ne.s32.totalorder %s28, %s31
      %p40 = scmp.eq.s32.totalorder %s23, 1
      %p41 = por %p39, %p40
      %p42 = scmp.ne.s32.totalorder %s31, %s32
      %p43 = scmp.eq.s32.totalorder %s23, 0
      %p44 = por %p42, %p43
      %p45 = scmp.ne.s32.totalorder %s31, %s32
      %p46 = scmp.eq.s32.totalorder %s24, 1
      %p47 = por %p45, %p46
      %p49 = scmp.ne.s32.totalorder %s32, %s48
      %p50 = scmp.eq.s32.totalorder %s24, 0
      %p51 = por %p49, %p50
      %s53 = sadd.s32 %s52, 1
      %p56 = scmp.eq.s32.totalorder %s18, 1
      %p57 = scmp.ne.s32.totalorder %s52, %s54
      %p58 = scmp.eq.s32.totalorder %s18, 0
      %p59 = por %p57, %p58
      %p60 = scmp.ne.s32.totalorder %s52, %s54
      %p61 = scmp.eq.s32.totalorder %s23, 1
      %p62 = por %p60, %p61
      %p63 = scmp.ne.s32.totalorder %s54, %s55
      %p64 = scmp.eq.s32.totalorder %s23, 0
      %p65 = por %p63, %p64
      %p66 = scmp.ne.s32.totalorder %s54, %s55
      %p67 = scmp.eq.s32.totalorder %s24, 1
      %p68 = por %p66, %p67
      %p70 = scmp.ne.s32.totalorder %s55, %s69
      %p71 = scmp.eq.s32.totalorder %s24, 0
      %p72 = por %p70, %p71
      %s74 = sadd.s32 %s73, 1
      %p77 = scmp.eq.s32.totalorder %s18, 1
      %p78 = scmp.ne.s32.totalorder %s73, %s75
      %p79 = scmp.eq.s32.totalorder %s18, 0
      %p80 = por %p78, %p79
      %p81 = scmp.ne.s32.totalorder %s73, %s75
      %p82 = scmp.eq.s32.totalorder %s23, 1
      %p83 = por %p81, %p82
      %p84 = scmp.ne.s32.totalorder %s75, %s76
      %p85 = scmp.eq.s32.totalorder %s23, 0
      %p86 = por %p84, %p85
      %p87 = scmp.ne.s32.totalorder %s75, %s76
      %p88 = scmp.eq.s32.totalorder %s24, 1
      %p89 = por %p87, %p88
      %p91 = scmp.ne.s32.totalorder %s76, %s90
      %p92 = scmp.eq.s32.totalorder %s24, 0
      %p93 = por %p91, %p92
      %s94 = ssub.s32 %s18, %s25
      %p95 = scmp.eq.s32.totalorder %s94, 0
      %s97 = sadd.s32 %s96, 1
      %s98 = scalar_select %p95, %s96, %s97
      %p101 = pneg %p95
      %p102 = scmp.eq.s32.totalorder %s18, 1
      %p103 = por %p101, %p102
      %p104 = scmp.ne.s32.totalorder %s96, %s99
      %p105 = scmp.eq.s32.totalorder %s18, 0
      %p106 = por %p104, %p105
      %p107 = scmp.ne.s32.totalorder %s96, %s99
      %p108 = scmp.eq.s32.totalorder %s23, 1
      %p109 = por %p107, %p108
      %p110 = scmp.ne.s32.totalorder %s99, %s100
      %p111 = scmp.eq.s32.totalorder %s23, 0
      %p112 = por %p110, %p111
      %p113 = scmp.ne.s32.totalorder %s99, %s100
      %p114 = scmp.eq.s32.totalorder %s24, 1
      %p115 = por %p113, %p114
      %p117 = scmp.ne.s32.totalorder %s100, %s116
      %p118 = scmp.eq.s32.totalorder %s24, 0
      %p119 = por %p117, %p118
      %s120 = ssub.s32 %s18, %s25
      %p121 = scmp.eq.s32.totalorder %s120, 0
      %s123 = sadd.s32 %s122, 1
      %s124 = scalar_select %p121, %s122, %s123
      %p127 = pneg %p121
      %p128 = scmp.eq.s32.totalorder %s18, 1
      %p129 = por %p127, %p128
      %p130 = scmp.ne.s32.totalorder %s122, %s125
      %p131 = scmp.eq.s32.totalorder %s18, 0
      %p132 = por %p130, %p131
      %p133 = scmp.ne.s32.totalorder %s122, %s125
      %p134 = scmp.eq.s32.totalorder %s23, 1
      %p135 = por %p133, %p134
      %p136 = scmp.ne.s32.totalorder %s125, %s126
      %p137 = scmp.eq.s32.totalorder %s23, 0
      %p138 = por %p136, %p137
      %p139 = scmp.ne.s32.totalorder %s125, %s126
      %p140 = scmp.eq.s32.totalorder %s24, 1
      %p141 = por %p139, %p140
      %p143 = scmp.ne.s32.totalorder %s126, %s142
      %p144 = scmp.eq.s32.totalorder %s24, 0
      %p145 = por %p143, %p144
      %s146 = ssub.s32 %s18, %s25
      %p147 = scmp.eq.s32.totalorder %s146, 0
      %s149 = sadd.s32 %s148, 1
      %s150 = scalar_select %p147, %s148, %s149
      %p153 = pneg %p147
      %p154 = scmp.eq.s32.totalorder %s18, 1
      %p155 = por %p153, %p154
      %p156 = scmp.ne.s32.totalorder %s148, %s151
      %p157 = scmp.eq.s32.totalorder %s18, 0
      %p158 = por %p156, %p157
      %p159 = scmp.ne.s32.totalorder %s148, %s151
      %p160 = scmp.eq.s32.totalorder %s23, 1
      %p161 = por %p159, %p160
      %p162 = scmp.ne.s32.totalorder %s151, %s152
      %p163 = scmp.eq.s32.totalorder %s23, 0
      %p164 = por %p162, %p163
      %p165 = scmp.ne.s32.totalorder %s151, %s152
      %p166 = scmp.eq.s32.totalorder %s24, 1
      %p167 = por %p165, %p166
      %p169 = scmp.ne.s32.totalorder %s152, %s168
      %p170 = scmp.eq.s32.totalorder %s24, 0
      %p171 = por %p169, %p170
      %p172 = scmp.le.s32.totalorder 1, %s18
      %p173 = scmp.lt.s32.totalorder %s18, 3
      %p174 = pnand %p172, %p173
      %p175 = pneg %p174
      // Predicated region
      $region9: #{tpu_custom_call.1} parent=5 // pred_check
        _
      $region10: #{tpu_custom_call.1} parent=5 // pred_check_branch
        %177 = sbr.rel (%p174) target = $region12
      $region11: #{tpu_custom_call.1} parent=5 // pred_region
        %s178 = ssub.s32 %s18, 1
        // Predicated region
        $region13: #{tpu_custom_call.1} parent=11 // pred_check
          %p179 = pneg %p65
        $region14: #{tpu_custom_call.1} parent=11 // pred_check_branch
          %181 = sbr.rel (%p179) target = $region16
        $region15: #{tpu_custom_call.1} parent=11 // pred_region
          _
        $region16: #{tpu_custom_call.1} parent=11 // pred_fallthru
          _
        // Predicated region
        $region17: #{tpu_custom_call.1} parent=11 // pred_check
          %p182 = pneg %p86
        $region18: #{tpu_custom_call.1} parent=11 // pred_check_branch
          %184 = sbr.rel (%p182) target = $region20
        $region19: #{tpu_custom_call.1} parent=11 // pred_region
          _
        $region20: #{tpu_custom_call.1} parent=11 // pred_fallthru
          _
      $region12: #{tpu_custom_call.1} parent=5 // pred_fallthru
        _
      %p185 = scmp.lt.s32.totalorder %s18, 2
      // Predicated region
      $region21: #{tpu_custom_call.1} parent=5 // pred_check
        %p186 = pneg %p185
      $region22: #{tpu_custom_call.1} parent=5 // pred_check_branch
        %188 = sbr.rel (%p186) target = $region24
      $region23: #{tpu_custom_call.1} parent=5 // pred_region
        // Predicated region
        $region25: #{tpu_custom_call.1} parent=23 // pred_check
          %p189 = pneg %p38
        $region26: #{tpu_custom_call.1} parent=23 // pred_check_branch
          %191 = sbr.rel (%p189) target = $region28
        $region27: #{tpu_custom_call.1} parent=23 // pred_region
          %s192 = smul.u32 8, %s18
          %p193 = scmp.lt.s32.totalorder %s192, 15
          %s194 = scalar_select %p193, %s192, 15
          %s195 = smul.addr %s194, 4
          %s196 = scalar_lea.vmem %s0, %s195
          %s197 = smul.u32 8, %s18
        $region28: #{tpu_custom_call.1} parent=23 // pred_fallthru
          _
      $region24: #{tpu_custom_call.1} parent=5 // pred_fallthru
        _
      %p198 = scmp.le.s32.totalorder 1, %s18
      %p199 = scmp.lt.s32.totalorder %s18, 3
      %p200 = pnand %p198, %p199
      %p201 = pneg %p200
      // Predicated region
      $region29: #{tpu_custom_call.1} parent=5 // pred_check
        _
      $region30: #{tpu_custom_call.1} parent=5 // pred_check_branch
        %203 = sbr.rel (%p200) target = $region32
      $region31: #{tpu_custom_call.1} parent=5 // pred_region
        %s204 = ssub.s32 %s18, 1
        %s205 = smul.u32 8, %s23
        %p206 = scmp.lt.s32.totalorder %s205, 15
        %s207 = scalar_select %p206, %s205, 15
        %s208 = smul.addr %s207, 4
        %s209 = scalar_lea.vmem %s0, %s208
        %p210 = pneg %p44
        %p211 = pneg %p41
        %p212 = pneg %p65
        %p213 = pneg %p62
        %p214 = pneg %p86
        %p215 = pneg %p83
        %p216 = pneg %p112
        %p217 = pneg %p109
        %s218 = sand.u32 %s99, 1
        %s219 = scalar_lea.sflag [#allocation3], %s218
        %s220 = sand.u32 %s99, 1
        %s221 = smul.addr %s220, 32
        %s222 = scalar_lea.vmem [#allocation2], %s221
        %p223 = pneg %p138
        %p224 = pneg %p135
        %s225 = sand.u32 %s23, 1
        %s226 = scalar_lea.sflag [#allocation5], %s225
        %s227 = sand.u32 %s125, 1
        %s228 = scalar_lea.vmem [#allocation4], %s227
        %p229 = pneg %p164
        %p230 = pneg %p161
        %s231 = sand.u32 %s23, 1
        %s232 = scalar_lea.sflag [#allocation5], %s231
        %s233 = sand.u32 %s151, 1
        %s234 = scalar_lea.vmem [#allocation6], %s233
        %s235 = smul.u32 8, %s23
        %p236 = scmp.lt.s32.totalorder %s235, 15
        %s237 = scalar_select %p236, %s235, 15
        %s238 = smul.addr %s237, 4
        %s239 = scalar_lea.vmem %s0, %s238
        %s240 = smul.u32 8, %s23
        %s241 = smul.u32 8, %s23
        %v243 = vld [vmem:[%s239] sm:$0xf]
        %v244 = vld [vmem:[%s239 + $0x4] sm:$0xf]
        %v245 = vld [vmem:[%s239 + $0x8] sm:$0xf]
        %v246 = vld [vmem:[%s239 + $0xc] sm:$0xf]
        %v247 = vld [vmem:[%s239 + $0x10] sm:$0xf]
        %v248 = vld [vmem:[%s239 + $0x14] sm:$0xf]
        %v249 = vld [vmem:[%s239 + $0x18] sm:$0xf]
        %v250 = vld [vmem:[%s239 + $0x1c] sm:$0xf]
        %v251 = vld [vmem:[%s1] sm:$0xf]
        %v252 = vld [vmem:[%s1 + $0x4] sm:$0xf]
        %v253 = vld [vmem:[%s1 + $0x8] sm:$0xf]
        %v254 = vld [vmem:[%s1 + $0xc] sm:$0xf]
        %v255 = vld [vmem:[%s1 + $0x10] sm:$0x3]
        %v256 = vld [vmem:[%s2] sm:$0x1]
        %v258 = vlaneseq
        %v259 = vshrl.u32 %v258, 7
        %v260 = vsub.s32 0, %v259
        %v261 = vrot.slane %v256, %v260
        %v271 = vunpack.c.l.b16 %v243
        %v272 = vunpack.c.l.b16 %v244
        %v273 = vunpack.c.l.b16 %v245
        %v274 = vunpack.c.l.b16 %v246
        %v275 = vunpack.c.l.b16 %v247
        %v276 = vunpack.c.l.b16 %v248
        %v277 = vunpack.c.l.b16 %v249
        %v278 = vunpack.c.l.b16 %v250
        %v279 = vpack.c.b16 %v272, %v271
        %v280 = vpack.c.b16 %v274, %v273
        %v281 = vpack.c.b16 %v276, %v275
        %v282 = vpack.c.b16 %v278, %v277
        %v288 = vunpack.c.l.b16 %v251
        %v289 = vunpack.c.l.b16 %v252
        %v290 = vunpack.c.l.b16 %v253
        %v291 = vunpack.c.l.b16 %v254
        %v292 = vunpack.c.l.b16 %v255
        %v293 = vpack.c.b16 %v289, %v288
        %v294 = vpack.c.b16 %v291, %v290
        %v295 = vpack.c.b16 %v292, %v292
        %vm298 = vcmask 293888
        %v300 = vsel %vm298, %v279, 0
        %v303 = vsel %vm298, %v280, 0
        %v306 = vsel %vm298, %v281, 0
        %v309 = vsel %vm298, %v282, 0
        %vm311 = vcmask 1041408
        %v313 = vsel %vm311, %v295, 0
        %315 = vmatprep.subr.bf16.mxu0 0
        %316 = vmatpush1.bf16.msra.mxu0 %v293
        %317 = vmatprep.subr.bf16.mxu0 0
        %318 = vmatpush1.bf16.msra.mxu0 %v294
        %319 = vmatprep.subr.bf16.mxu0 0
        %320 = vmatpush1.bf16.msra.mxu0 %v313
        %321 = vmatprep.subr.bf16.mxu0 0
        %322 = vmatpush1.bf16.msra.mxu0 0
        %323 = vmatprep.subr.bf16.mxu0 0
        %324 = vmatpush1.bf16.msra.mxu0 0
        %325 = vmatprep.subr.bf16.mxu0 0
        %326 = vmatpush1.bf16.msra.mxu0 0
        %327 = vmatprep.subr.bf16.mxu0 0
        %328 = vmatpush1.bf16.msra.mxu0 0
        %329 = vmatprep.subr.bf16.mxu0 0
        %330 = vmatpush1.bf16.msra.mxu0 0
        %331 = vmatprep.subr.bf16.mxu0 0
        %332 = vmatpush1.bf16.msra.mxu0 0
        %333 = vmatprep.subr.bf16.mxu0 0
        %334 = vmatpush1.bf16.msra.mxu0 0
        %335 = vmatprep.subr.bf16.mxu0 0
        %336 = vmatpush1.bf16.msra.mxu0 0
        %337 = vmatprep.subr.bf16.mxu0 0
        %338 = vmatpush1.bf16.msra.mxu0 0
        %339 = vmatprep.subr.bf16.mxu0 0
        %340 = vmatpush1.bf16.msra.mxu0 0
        %341 = vmatprep.subr.bf16.mxu0 0
        %342 = vmatpush1.bf16.msra.mxu0 0
        %343 = vmatprep.subr.bf16.mxu0 0
        %344 = vmatpush1.bf16.msra.mxu0 0
        %345 = vmatprep.subr.bf16.mxu0 0
        %346 = vmatpush1.bf16.msra.mxu0 0
        %347 = vmatprep.mubr.bf16.mxu0 0
        %348 = vmatmul.mubr.bf16.gmra.mrb[0].mxu0 %v300
        %v349 = vpop.f32.mrb[0].mxu0
        %v350 = vadd.f32 %v261, %v349
        %v351 = vpop.f32.mrb[0].mxu0
        %v352 = vpop.f32.mrb[0].mxu0
        %v353 = vadd.f32 %v261, %v352
        %v354 = vpop.f32.mrb[0].mxu0
        %355 = vmatprep.mubr.bf16.mxu0 0
        %356 = vmatmul.mubr.bf16.gmra.mrb[0].mxu0 %v303
        %v357 = vpop.f32.mrb[0].mxu0
        %v358 = vadd.f32 %v261, %v357
        %v359 = vpop.f32.mrb[0].mxu0
        %v360 = vpop.f32.mrb[0].mxu0
        %v361 = vadd.f32 %v261, %v360
        %v362 = vpop.f32.mrb[0].mxu0
        %363 = vmatprep.mubr.bf16.mxu0 0
        %364 = vmatmul.mubr.bf16.gmra.mrb[0].mxu0 %v306
        %v365 = vpop.f32.mrb[0].mxu0
        %v366 = vadd.f32 %v261, %v365
        %v367 = vpop.f32.mrb[0].mxu0
        %v368 = vpop.f32.mrb[0].mxu0
        %v369 = vadd.f32 %v261, %v368
        %v370 = vpop.f32.mrb[0].mxu0
        %371 = vmatprep.mubr.bf16.mxu0 0
        %372 = vmatmul.mubr.bf16.gmra.mrb[0].mxu0 %v309
        %v373 = vpop.f32.mrb[0].mxu0
        %v374 = vadd.f32 %v261, %v373
        %v375 = vpop.f32.mrb[0].mxu0
        %v376 = vpop.f32.mrb[0].mxu0
        %v377 = vadd.f32 %v261, %v376
        %v378 = vpop.f32.mrb[0].mxu0
        %379 = vdwg.mxu0
        %v380 = vpack.c.bf16 %v353, %v350
        %v381 = vpack.c.bf16 %v361, %v358
        %v382 = vpack.c.bf16 %v369, %v366
        %v383 = vpack.c.bf16 %v377, %v374
        %v388 = vunpack.c.l.b16 %v380
        %v389 = vunpack.c.h.b16 %v380
        %v390 = vunpack.c.l.b16 %v381
        %v391 = vunpack.c.h.b16 %v381
        %v392 = vunpack.c.l.b16 %v382
        %v393 = vunpack.c.h.b16 %v382
        %v394 = vunpack.c.l.b16 %v383
        %v395 = vunpack.c.h.b16 %v383
        %v396 = vpack.c.b16 %v388, %v388
        %v397 = vpack.c.b16 %v389, %v389
        %v398 = vpack.c.b16 %v390, %v390
        %v399 = vpack.c.b16 %v391, %v391
        %v400 = vpack.c.b16 %v392, %v392
        %v401 = vpack.c.b16 %v393, %v393
        %v402 = vpack.c.b16 %v394, %v394
        %v403 = vpack.c.b16 %v395, %v395
        %412 = vst [vmem:[%s222] sm:$0xf] %v396
        %413 = vst [vmem:[%s222 + $0x4] sm:$0xf] %v397
        %414 = vst [vmem:[%s222 + $0x8] sm:$0xf] %v398
        %415 = vst [vmem:[%s222 + $0xc] sm:$0xf] %v399
        %416 = vst [vmem:[%s222 + $0x10] sm:$0xf] %v400
        %417 = vst [vmem:[%s222 + $0x14] sm:$0xf] %v401
        %418 = vst [vmem:[%s222 + $0x18] sm:$0xf] %v402
        %419 = vst [vmem:[%s222 + $0x1c] sm:$0xf] %v403
        %v420 = vunpack.c.l.bf16 %v380
        %v421 = vunpack.c.h.bf16 %v380
        %v422 = vunpack.c.l.bf16 %v381
        %v423 = vunpack.c.h.bf16 %v381
        %v424 = vunpack.c.l.bf16 %v382
        %v425 = vunpack.c.h.bf16 %v382
        %v426 = vunpack.c.l.bf16 %v383
        %v427 = vunpack.c.h.bf16 %v383
        %v428 = vadd.f32 %v420, %v421
        %v429 = vadd.f32 %v428, %v422
        %v430 = vadd.f32 %v429, %v423
        %v431 = vadd.f32 %v430, %v424
        %v432 = vadd.f32 %v431, %v425
        %v433 = vadd.f32 %v432, %v426
        %v434 = vadd.f32 %v433, %v427
        %v435 = vrot.slane %v434, 4
        %v436 = vadd.f32 %v434, %v435
        %v437 = vrot.slane %v436, 2
        %v438 = vadd.f32 %v436, %v437
        %v439 = vrot.slane %v438, 1
        %v440 = vadd.f32 %v438, %v439
        %441 = vst [vmem:[%s228] sm:$0x1] %v440
        %v442 = vmul.f32 %v420, %v420
        %v443 = vmul.f32 %v421, %v421
        %v444 = vmul.f32 %v422, %v422
        %v445 = vmul.f32 %v423, %v423
        %v446 = vmul.f32 %v424, %v424
        %v447 = vmul.f32 %v425, %v425
        %v448 = vmul.f32 %v426, %v426
        %v449 = vmul.f32 %v427, %v427
        %v450 = vadd.f32 %v442, %v443
        %v451 = vadd.f32 %v450, %v444
        %v452 = vadd.f32 %v451, %v445
        %v453 = vadd.f32 %v452, %v446
        %v454 = vadd.f32 %v453, %v447
        %v455 = vadd.f32 %v454, %v448
        %v456 = vadd.f32 %v455, %v449
        %v457 = vrot.slane %v456, 4
        %v458 = vadd.f32 %v456, %v457
        %v459 = vrot.slane %v458, 2
        %v460 = vadd.f32 %v458, %v459
        %v461 = vrot.slane %v460, 1
        %v462 = vadd.f32 %v460, %v461
        %463 = vst [vmem:[%s234] sm:$0x1] %v462
        %s464 = sand.u32 %s99, 1
        %s465 = scalar_lea.sflag [#allocation3], %s464
        %s466 = sand.u32 %s99, 1
        %s467 = smul.addr %s466, 32
        %s468 = scalar_lea.vmem [#allocation2], %s467
        %s469 = sand.u32 %s23, 1
        %s470 = scalar_lea.sflag [#allocation5], %s469
        %s471 = sand.u32 %s125, 1
        %s472 = scalar_lea.vmem [#allocation4], %s471
        %s473 = sand.u32 %s23, 1
        %s474 = scalar_lea.sflag [#allocation5], %s473
        %s475 = sand.u32 %s151, 1
        %s476 = scalar_lea.vmem [#allocation6], %s475
        // Predicated region
        $region33: #{tpu_custom_call.1} parent=31 // pred_check
          %p477 = pneg %p109
        $region34: #{tpu_custom_call.1} parent=31 // pred_check_branch
          %479 = sbr.rel (%p477) target = $region36
        $region35: #{tpu_custom_call.1} parent=31 // pred_region
          %s480 = smul.u32 8, %s23
          %s482 = ssub.s32 512, 512
          %483 = vsyncadd %s465, %s482
          %s484 = smul.addr %s480, 64
          %s485 = scalar_lea.hbm %s3, %s484
          %s486 = sshll.u32 %s468, 4
          %s487 = int_to_ptr.vmem [resolvable:$true] %s486
          %492 = dma.vmem_to_hbm [thread:$0]  %s487, 512, %s485, %s465, 64, 64, 4
        $region36: #{tpu_custom_call.1} parent=31 // pred_fallthru
          _
        // Predicated region
        $region37: #{tpu_custom_call.1} parent=31 // pred_check
          %p493 = pneg %p135
        $region38: #{tpu_custom_call.1} parent=31 // pred_check_branch
          %495 = sbr.rel (%p493) target = $region40
        $region39: #{tpu_custom_call.1} parent=31 // pred_region
          %s497 = ssub.s32 16, 16
          %498 = vsyncadd %s470, %s497
          %s499 = smul.addr %s23, 16
          %s500 = scalar_lea.hbm %s4, %s499
          %s502 = sshll.u32 %s472, 4
          %s503 = int_to_ptr.vmem [resolvable:$true] %s502
          %505 = dma.vmem_to_hbm [thread:$0]  %s503, 16, %s500, %s470
        $region40: #{tpu_custom_call.1} parent=31 // pred_fallthru
          _
        // Predicated region
        $region41: #{tpu_custom_call.1} parent=31 // pred_check
          %p506 = pneg %p161
        $region42: #{tpu_custom_call.1} parent=31 // pred_check_branch
          %508 = sbr.rel (%p506) target = $region44
        $region43: #{tpu_custom_call.1} parent=31 // pred_region
          %s510 = ssub.s32 16, 16
          %511 = vsyncadd %s474, %s510
          %s512 = smul.addr %s23, 16
          %s513 = scalar_lea.hbm %s5, %s512
          %s515 = sshll.u32 %s476, 4
          %s516 = int_to_ptr.vmem [resolvable:$true] %s515
          %518 = dma.vmem_to_hbm [thread:$0]  %s516, 16, %s513, %s474
        $region44: #{tpu_custom_call.1} parent=31 // pred_fallthru
          _
      $region32: #{tpu_custom_call.1} parent=5 // pred_fallthru
        _
      %p519 = scmp.le.s32.totalorder 2, %s18
      // Predicated region
      $region45: #{tpu_custom_call.1} parent=5 // pred_check
        %p520 = pneg %p519
      $region46: #{tpu_custom_call.1} parent=5 // pred_check_branch
        %522 = sbr.rel (%p520) target = $region48
      $region47: #{tpu_custom_call.1} parent=5 // pred_region
        %s523 = ssub.s32 %s18, 2
        // Predicated region
        $region49: #{tpu_custom_call.1} parent=47 // pred_check
          %p524 = pneg %p115
        $region50: #{tpu_custom_call.1} parent=47 // pred_check_branch
          %526 = sbr.rel (%p524) target = $region52
        $region51: #{tpu_custom_call.1} parent=47 // pred_region
          %s527 = sand.u32 %s100, 1
          %s528 = scalar_lea.sflag [#allocation3], %s527
          %s529 = sand.u32 %s100, 1
          %s530 = smul.addr %s529, 32
          %s531 = scalar_lea.vmem [#allocation2], %s530
          %532 = dma.done %s528, 512
        $region52: #{tpu_custom_call.1} parent=47 // pred_fallthru
          _
        // Predicated region
        $region53: #{tpu_custom_call.1} parent=47 // pred_check
          %p533 = pneg %p141
        $region54: #{tpu_custom_call.1} parent=47 // pred_check_branch
          %535 = sbr.rel (%p533) target = $region56
        $region55: #{tpu_custom_call.1} parent=47 // pred_region
          %s536 = sand.u32 %s24, 1
          %s537 = scalar_lea.sflag [#allocation5], %s536
          %s538 = sand.u32 %s126, 1
          %s539 = scalar_lea.vmem [#allocation4], %s538
          %540 = dma.done %s537, 16
        $region56: #{tpu_custom_call.1} parent=47 // pred_fallthru
          _
        // Predicated region
        $region57: #{tpu_custom_call.1} parent=47 // pred_check
          %p541 = pneg %p167
        $region58: #{tpu_custom_call.1} parent=47 // pred_check_branch
          %543 = sbr.rel (%p541) target = $region60
        $region59: #{tpu_custom_call.1} parent=47 // pred_region
          %s544 = sand.u32 %s24, 1
          %s545 = scalar_lea.sflag [#allocation5], %s544
          %s546 = sand.u32 %s152, 1
          %s547 = scalar_lea.vmem [#allocation6], %s546
          %548 = dma.done %s545, 16
        $region60: #{tpu_custom_call.1} parent=47 // pred_fallthru
          _
      $region48: #{tpu_custom_call.1} parent=5 // pred_fallthru
        _
    $region6: #{tpu_custom_call.1} parent=1 // loop_footer
      %s22 = sadd.s32 1, %s18
    $region7: #{tpu_custom_call.1} parent=1 // loop_footer_branch
      %17 = sbr.rel target = $region3
    $region8: #{tpu_custom_call.1} parent=1 // loop_exit
      _
    %549 = vsyncpa [#allocation3], 1
    %s550 = scalar_lea.sflag [#allocation3], 1
    %551 = vsyncpa %s550, 1
    %552 = vsyncpa [#allocation5], 1
    %s553 = scalar_lea.sflag [#allocation5], 1
    %554 = vsyncpa %s553, 1

</llo_original>
